<compile_context>
chip_gen: v6e
topology: v6e:2x2x1
jax: 0.10.0
libtpu: 0.0.40
codegen_flags: <defaults>
</compile_context>

<pallas_src>
import functools

import jax
import jax.numpy as jnp
from jax import lax
from jax.experimental import pallas as pl
from jax.experimental.pallas import tpu as pltpu


# Cap on the spatial tile width (lanes) so the statically-unrolled in-kernel
# chunk loop stays small (<= 64 chunks of 128 lanes).
_MAX_BLOCK_LANES = 8192


def _largest_divisor_leq(n, cap):
    cap = max(1, min(n, cap))
    for d in range(cap, 0, -1):
        if n % d == 0:
            return d
    return 1


def _channel_attention_kernel(
    x_ref, w1a_ref, w2a_ref, w1b_ref, w2b_ref, o_ref, sum_acc, max_acc,
    *, hw, lane, c_sub,
):
    # x_ref:   (block_n, C, block_hw)   streamed tile
    # weights: (C, Hd), (Hd, C), (C, Hd), (Hd, C)   (resident in VMEM)
    # o_ref:   (block_n, 1, C)
    # scratch: sum_acc / max_acc -> (block_n, C, lane) f32 lane-partials
    s = pl.program_id(1)
    n_s = pl.num_programs(1)
    block_n, C, block_hw = x_ref.shape
    n_chunks_full = block_hw // lane
    needs_mask = (hw % block_hw) != 0            # static Python bool

    @pl.when(s == 0)
    def _init():
        sum_acc[...] = jnp.zeros(sum_acc.shape, jnp.float32)
        max_acc[...] = jnp.full(max_acc.shape, -jnp.inf, jnp.float32)

    def partial_stats(c0, csz, n_chunks, rem):
        """Vreg-carried lane-partial sum/max over `n_chunks` full chunks plus
        an optional masked tail chunk with `rem` valid lanes (all static)."""
        psum = pmax = None

        def fold(sum_piece, max_piece):
            nonlocal psum, pmax
            if psum is None:
                psum, pmax = sum_piece, max_piece
            else:
                psum = psum + sum_piece
                pmax = jnp.maximum(pmax, max_piece)

        for k in range(n_chunks):                           # static unroll
            chunk = x_ref[:, c0:c0 + csz,
                          pl.ds(k * lane, lane)].astype(jnp.float32)
            fold(chunk, chunk)
        if rem > 0:                                         # ragged tail only
            chunk = x_ref[:, c0:c0 + csz,
                          pl.ds(n_chunks * lane, lane)].astype(jnp.float32)
            valid = lax.broadcasted_iota(jnp.int32, chunk.shape, 2) < rem
            fold(jnp.where(valid, chunk, 0.0),
                 jnp.where(valid, chunk, -jnp.inf))
        return psum, pmax

    def accumulate(n_chunks, rem):
        # One scratch RMW per channel sub-block per grid step (not per chunk).
        for c0 in range(0, C, c_sub):
            csz = min(c_sub, C - c0)
            psum, pmax = partial_stats(c0, csz, n_chunks, rem)
            sum_acc[:, c0:c0 + csz, :] = sum_acc[:, c0:c0 + csz, :] + psum
            max_acc[:, c0:c0 + csz, :] = jnp.maximum(
                max_acc[:, c0:c0 + csz, :], pmax)

    if needs_mask:
        tail = hw % block_hw                    # static, > 0
        n_full_last = tail // lane
        rem_last = tail - n_full_last * lane

        @pl.when(s == n_s - 1)
        def _last_tile():                       # masked path: last tile only
            accumulate(n_full_last, rem_last)

        @pl.when(s != n_s - 1)
        def _full_tiles():                      # mask-free steady-state path
            accumulate(n_chunks_full, 0)
    else:
        accumulate(n_chunks_full, 0)

    # Epilogue: cross-lane reduce + tiny MLPs + sigmoid, once per batch block.
    @pl.when(s == n_s - 1)
    def _finalize():
        x_avg = jnp.sum(sum_acc[...], axis=-1) * (1.0 / hw)     # (block_n, C)
        x_max = jnp.max(max_acc[...], axis=-1)                  # (block_n, C)

        h_a = jnp.maximum(
            jnp.dot(x_avg, w1a_ref[...], preferred_element_type=jnp.float32), 0.0)
        y_a = jnp.dot(h_a, w2a_ref[...], preferred_element_type=jnp.float32)

        h_b = jnp.maximum(
            jnp.dot(x_max, w1b_ref[...], preferred_element_type=jnp.float32), 0.0)
        y_b = jnp.dot(h_b, w2b_ref[...], preferred_element_type=jnp.float32)

        o_ref[...] = jax.nn.sigmoid(y_a + y_b)[:, None, :].astype(o_ref.dtype)


def channel_attention(x, w1a, w2a, w1b, w2b, *, block_n=None, block_hw=None):
    """x: (N, C, H, W); w1*: (hidden, C); w2*: (C, hidden). Returns (N, C, 1, 1)."""
    N, C, H, W = x.shape
    hidden = w1a.shape[0]
    HW = H * W
    itemsize = x.dtype.itemsize

    # ---- generation-aware VMEM budget ------------------------------------
    try:
        vmem_capacity = int(pltpu.get_tpu_info().vmem_capacity_bytes)
    except Exception:                     # conservative fallback (v7x-sized)
        vmem_capacity = 64 << 20
    vmem_cap = (3 * vmem_capacity) // 4   # leave headroom for Mosaic internals
    target_tile_bytes = (16 << 20) if vmem_capacity >= (96 << 20) else (8 << 20)

    # ---- spatial (lane) tile first: longest contiguous DMA runs -----------
    if block_hw is None:
        budget_lanes = max(128, target_tile_bytes // max(1, C * itemsize))
        block_hw = min(HW, budget_lanes, _MAX_BLOCK_LANES)
    block_hw = min(int(block_hw), HW)
    if block_hw < HW:
        block_hw = max(128, (block_hw // 128) * 128)   # lane-dense full tiles
        if block_hw >= HW:
            block_hw = HW

    # ---- batch tile second (fills the tile-byte target) -------------------
    auto_block_n = block_n is None
    if auto_block_n:
        per_sample = C * block_hw * itemsize
        block_n = int(max(1, min(N, target_tile_bytes // max(1, per_sample))))
    block_n = max(1, min(int(block_n), N))
    # Megacore: keep the "parallel" batch axis at >= 2 blocks when possible.
    if auto_block_n and N >= 2 and pl.cdiv(N, block_n) < 2:
        block_n = pl.cdiv(N, 2)

    lane = 128 if block_hw % 128 == 0 else block_hw
    lane_pad = pl.cdiv(lane, 128) * 128

    # Carry (vreg) budget for the sum+max lane-partials: ~64 KiB (~16 vregs).
    carry_budget_bytes = 64 * 1024
    c_cap = max(1, carry_budget_bytes // (2 * block_n * lane_pad * 4))
    c_sub = C if C <= c_cap else _largest_divisor_leq(C, c_cap)

    x_flat = x.reshape(N, C, HW)
    # Pre-transpose weights so the kernel right-multiplies: (B,C)@(C,Hd)@(Hd,C).
    w1a_t, w2a_t, w1b_t, w2b_t = w1a.T, w2a.T, w1b.T, w2b.T

    grid = (pl.cdiv(N, block_n), pl.cdiv(HW, block_hw))

    kernel = functools.partial(
        _channel_attention_kernel, hw=HW, lane=lane, c_sub=c_sub)

    # Explicit VMEM budget: 2 x-tile buffers + accumulators + weights + slack,
    # clamped to a generation-aware cap (headroom on 64 MiB-VMEM parts).
    tile_bytes = block_n * C * block_hw * itemsize
    acc_bytes = 2 * block_n * C * lane_pad * 4
    w_bytes = 2 * 4 * C * hidden * w1a.dtype.itemsize
    out_bytes = 2 * block_n * max(C, 128) * itemsize
    vmem_limit = int(min(max(2 * tile_bytes + acc_bytes + w_bytes + out_bytes
                             + (8 << 20), 32 << 20), vmem_cap))

    grid_spec = pltpu.PrefetchScalarGridSpec(
        num_scalar_prefetch=0,
        grid=grid,
        in_specs=[
            pl.BlockSpec((block_n, C, block_hw), lambda b, s: (b, 0, s)),
            pl.BlockSpec((C, hidden), lambda b, s: (0, 0)),
            pl.BlockSpec((hidden, C), lambda b, s: (0, 0)),
            pl.BlockSpec((C, hidden), lambda b, s: (0, 0)),
            pl.BlockSpec((hidden, C), lambda b, s: (0, 0)),
        ],
        out_specs=pl.BlockSpec((block_n, 1, C), lambda b, s: (b, 0, 0)),
        scratch_shapes=[
            pltpu.VMEM((block_n, C, lane), jnp.float32),   # sum lane-partials
            pltpu.VMEM((block_n, C, lane), jnp.float32),   # max lane-partials
        ],
    )

    out = pl.pallas_call(
        kernel,
        out_shape=jax.ShapeDtypeStruct((N, 1, C), x.dtype),
        grid_spec=grid_spec,
        compiler_params=pltpu.CompilerParams(
            dimension_semantics=("parallel", "arbitrary"),
            vmem_limit_bytes=vmem_limit,
        ),
    )(x_flat, w1a_t, w2a_t, w1b_t, w2b_t)

    return out.reshape(N, C, 1, 1)


def channel_attention_ref(x, w1a, w2a, w1b, w2b):
    """Plain-JAX reference mirroring the PyTorch forward."""
    x = x.astype(jnp.float32)
    x_avg = jnp.mean(x, axis=(2, 3))                        # (N, C)
    x_max = jnp.max(x, axis=(2, 3))                         # (N, C)
    y_a = jnp.maximum(x_avg @ w1a.T, 0.0) @ w2a.T
    y_b = jnp.maximum(x_max @ w1b.T, 0.0) @ w2b.T
    return jax.nn.sigmoid(y_a + y_b)[:, :, None, None]


if __name__ == "__main__":
    key = jax.random.PRNGKey(0)
    key_a, key_b, key_c, key_d = jax.random.split(key, 4)

    def make_inputs(k, N, C, H, W, ratio):
        hidden = max(1, C // ratio)
        kx, k1, k2, k3, k4 = jax.random.split(k, 5)
        x = jax.random.normal(kx, (N, C, H, W), dtype=jnp.float32)
        # 1x1 conv weights (out_ch, in_ch, 1, 1) -> dense (out_ch, in_ch), no bias.
        w1a = jax.random.normal(k1, (hidden, C), dtype=jnp.float32) * 0.1
        w2a = jax.random.normal(k2, (C, hidden), dtype=jnp.float32) * 0.1
        w1b = jax.random.normal(k3, (hidden, C), dtype=jnp.float32) * 0.1
        w2b = jax.random.normal(k4, (C, hidden), dtype=jnp.float32) * 0.1
        return x, w1a, w2a, w1b, w2b

    def check(out, ref):
        assert out.shape == ref.shape, (out.shape, ref.shape)
        err = float(jnp.max(jnp.abs(out - ref)))
        assert jnp.allclose(out, ref, atol=1e-5, rtol=1e-5), err

    # Case 1: default tiling (single spatial block, two parallel batch blocks).
    args = make_inputs(key_a, 2, 32, 16, 16, 16)
    ref = channel_attention_ref(*args)
    out = jax.block_until_ready(channel_attention(*args))
    assert out.shape == (2, 32, 1, 1), out.shape
    check(out, ref)

    # Case 2: explicit small tiles -> multi-step pipelined reduction
    # (grid = (2, 2); exercises init / accumulate / finalize paths).
    out = jax.block_until_ready(
        channel_attention(*args, block_n=1, block_hw=128))
    check(out, ref)

    # Case 3: ragged spatial extent (HW = 200, 128-wide tiles) -> exercises the
    # masked-tail-only path of the last spatial tile.
    args2 = make_inputs(key_b, 2, 32, 10, 20, 16)
    ref2 = channel_attention_ref(*args2)
    out2 = jax.block_until_ready(channel_attention(*args2, block_hw=128))
    check(out2, ref2)

    # Case 4: partial batch block (N = 3 with block_n = 2) + multi-row tiles.
    args3 = make_inputs(key_c, 3, 32, 16, 16, 16)
    ref3 = channel_attention_ref(*args3)
    out3 = jax.block_until_ready(
        channel_attention(*args3, block_n=2, block_hw=128))
    check(out3, ref3)

    # Case 5: larger spatial extent with default tiling -> exercises the longer
    # statically-unrolled chunk loop with vreg-carried partials.
    args4 = make_inputs(key_d, 2, 8, 64, 64, 4)
    ref4 = channel_attention_ref(*args4)
    out4 = jax.block_until_ready(channel_attention(*args4))
    check(out4, ref4)

    print("KERNEL_OK")
</pallas_src>

<mosaic_0001>
module attributes {stable_mosaic.version = 11 : i64} {
  func.func @_channel_attention_kernel(%arg0: i32, %arg1: i32, %arg2: memref<1x32x256xf32, #tpu.memory_space<vmem>>, %arg3: memref<32x2xf32, #tpu.memory_space<vmem>>, %arg4: memref<2x32xf32, #tpu.memory_space<vmem>>, %arg5: memref<32x2xf32, #tpu.memory_space<vmem>>, %arg6: memref<2x32xf32, #tpu.memory_space<vmem>>, %arg7: memref<1x1x32xf32, #tpu.memory_space<vmem>>, %arg8: memref<1x32x128xf32, #tpu.memory_space<vmem>>, %arg9: memref<1x32x128xf32, #tpu.memory_space<vmem>>) attributes {dimension_semantics = [#tpu.dimension_semantics<parallel>, #tpu.dimension_semantics<arbitrary>], iteration_bounds = array<i64: 2, 1>, scalar_prefetch = 0 : i64, scratch_operands = 2 : i64, tpu.core_type = #tpu.core_type<tc>, window_params = [{transform_indices = @transform_0, window_bounds = array<i64: 1, 32, 256>}, {pipeline_mode = #tpu.pipeline_mode<synchronous>, transform_indices = @transform_1, window_bounds = array<i64: 32, 2>}, {pipeline_mode = #tpu.pipeline_mode<synchronous>, transform_indices = @transform_2, window_bounds = array<i64: 2, 32>}, {pipeline_mode = #tpu.pipeline_mode<synchronous>, transform_indices = @transform_3, window_bounds = array<i64: 32, 2>}, {pipeline_mode = #tpu.pipeline_mode<synchronous>, transform_indices = @transform_4, window_bounds = array<i64: 2, 32>}, {transform_indices = @transform_5, window_bounds = array<i64: 1, 1, 32>}]} {
    %c0_i32 = arith.constant 0 : i32
    %0 = arith.cmpi eq, %arg1, %c0_i32 : i32
    %1 = arith.extui %0 : i1 to i32
    %c0_i32_0 = arith.constant 0 : i32
    %2 = arith.cmpi ne, %1, %c0_i32_0 : i32
    scf.if %2 {
      %cst = arith.constant 0.000000e+00 : f32
      %16 = vector.broadcast %cst : f32 to vector<1x32x128xf32>
      %c0_19 = arith.constant 0 : index
      %c0_20 = arith.constant 0 : index
      %c0_21 = arith.constant 0 : index
      %17 = vector.load %arg8[%c0_19, %c0_20, %c0_21] : memref<1x32x128xf32, #tpu.memory_space<vmem>>, vector<1x32x128xf32>
      tpu.vector_store %arg8[%c0_19, %c0_20, %c0_21], %16 {strides = array<i32>} : memref<1x32x128xf32, #tpu.memory_space<vmem>>, vector<1x32x128xf32>,
      %cst_22 = arith.constant 0xFF800000 : f32
      %18 = vector.broadcast %cst_22 : f32 to vector<1x32x128xf32>
      %c0_23 = arith.constant 0 : index
      %c0_24 = arith.constant 0 : index
      %c0_25 = arith.constant 0 : index
      %19 = vector.load %arg9[%c0_23, %c0_24, %c0_25] : memref<1x32x128xf32, #tpu.memory_space<vmem>>, vector<1x32x128xf32>
      tpu.vector_store %arg9[%c0_23, %c0_24, %c0_25], %18 {strides = array<i32>} : memref<1x32x128xf32, #tpu.memory_space<vmem>>, vector<1x32x128xf32>,
    } else {
    }
    %c0 = arith.constant 0 : index
    %c0_1 = arith.constant 0 : index
    %c0_2 = arith.constant 0 : index
    %3 = vector.load %arg2[%c0, %c0_1, %c0_2] : memref<1x32x256xf32, #tpu.memory_space<vmem>>, vector<1x32x128xf32>
    %c0_3 = arith.constant 0 : index
    %c0_4 = arith.constant 0 : index
    %c128 = arith.constant 128 : index
    %4 = vector.load %arg2[%c0_3, %c0_4, %c128] : memref<1x32x256xf32, #tpu.memory_space<vmem>>, vector<1x32x128xf32>
    %5 = arith.addf %3, %4 : vector<1x32x128xf32>
    %6 = arith.maximumf %3, %4 : vector<1x32x128xf32>
    %c0_5 = arith.constant 0 : index
    %c0_6 = arith.constant 0 : index
    %c0_7 = arith.constant 0 : index
    %7 = vector.load %arg8[%c0_5, %c0_6, %c0_7] : memref<1x32x128xf32, #tpu.memory_space<vmem>>, vector<1x32x128xf32>
    %8 = arith.addf %7, %5 : vector<1x32x128xf32>
    %c0_8 = arith.constant 0 : index
    %c0_9 = arith.constant 0 : index
    %c0_10 = arith.constant 0 : index
    %9 = vector.load %arg8[%c0_8, %c0_9, %c0_10] : memref<1x32x128xf32, #tpu.memory_space<vmem>>, vector<1x32x128xf32>
    tpu.vector_store %arg8[%c0_8, %c0_9, %c0_10], %8 {strides = array<i32>} : memref<1x32x128xf32, #tpu.memory_space<vmem>>, vector<1x32x128xf32>,
    %c0_11 = arith.constant 0 : index
    %c0_12 = arith.constant 0 : index
    %c0_13 = arith.constant 0 : index
    %10 = vector.load %arg9[%c0_11, %c0_12, %c0_13] : memref<1x32x128xf32, #tpu.memory_space<vmem>>, vector<1x32x128xf32>
    %11 = arith.maximumf %10, %6 : vector<1x32x128xf32>
    %c0_14 = arith.constant 0 : index
    %c0_15 = arith.constant 0 : index
    %c0_16 = arith.constant 0 : index
    %12 = vector.load %arg9[%c0_14, %c0_15, %c0_16] : memref<1x32x128xf32, #tpu.memory_space<vmem>>, vector<1x32x128xf32>
    tpu.vector_store %arg9[%c0_14, %c0_15, %c0_16], %11 {strides = array<i32>} : memref<1x32x128xf32, #tpu.memory_space<vmem>>, vector<1x32x128xf32>,
    %c0_i32_17 = arith.constant 0 : i32
    %13 = arith.cmpi eq, %arg1, %c0_i32_17 : i32
    %14 = arith.extui %13 : i1 to i32
    %c0_i32_18 = arith.constant 0 : i32
    %15 = arith.cmpi ne, %14, %c0_i32_18 : i32
    scf.if %15 {
      %c0_19 = arith.constant 0 : index
      %c0_20 = arith.constant 0 : index
      %c0_21 = arith.constant 0 : index
      %16 = vector.load %arg8[%c0_19, %c0_20, %c0_21] : memref<1x32x128xf32, #tpu.memory_space<vmem>>, vector<1x32x128xf32>
      %cst = arith.constant dense<0.000000e+00> : vector<1x32xf32>
      %17 = vector.multi_reduction <add>, %16, %cst [2] : vector<1x32x128xf32> to vector<1x32xf32>
      %cst_22 = arith.constant 3.906250e-03 : f32
      %18 = vector.broadcast %cst_22 : f32 to vector<1x32xf32>
      %19 = arith.mulf %17, %18 : vector<1x32xf32>
      %c0_23 = arith.constant 0 : index
      %c0_24 = arith.constant 0 : index
      %c0_25 = arith.constant 0 : index
      %20 = vector.load %arg9[%c0_23, %c0_24, %c0_25] : memref<1x32x128xf32, #tpu.memory_space<vmem>>, vector<1x32x128xf32>
      %cst_26 = arith.constant dense<0xFF800000> : vector<1x32xf32>
      %21 = vector.multi_reduction <maximumf>, %20, %cst_26 [2] : vector<1x32x128xf32> to vector<1x32xf32>
      %c0_27 = arith.constant 0 : index
      %c0_28 = arith.constant 0 : index
      %22 = vector.load %arg3[%c0_27, %c0_28] : memref<32x2xf32, #tpu.memory_space<vmem>>, vector<32x2xf32>
      %cst_29 = arith.constant dense<0.000000e+00> : vector<1x2xf32>
      %23 = tpu.matmul %19, %22, %cst_29 {dimension_numbers = #tpu.dot_dimension_numbers<[1], [0], [0], [1], [0, 0, 1, 1], [], []>} : vector<1x32xf32>, vector<32x2xf32>, vector<1x2xf32> -> vector<1x2xf32>
      %cst_30 = arith.constant 0.000000e+00 : f32
      %24 = vector.broadcast %cst_30 : f32 to vector<1x2xf32>
      %25 = arith.maximumf %23, %24 : vector<1x2xf32>
      %c0_31 = arith.constant 0 : index
      %c0_32 = arith.constant 0 : index
      %26 = vector.load %arg4[%c0_31, %c0_32] : memref<2x32xf32, #tpu.memory_space<vmem>>, vector<2x32xf32>
      %cst_33 = arith.constant dense<0.000000e+00> : vector<1x32xf32>
      %27 = tpu.matmul %25, %26, %cst_33 {dimension_numbers = #tpu.dot_dimension_numbers<[1], [0], [0], [1], [0, 0, 1, 1], [], []>} : vector<1x2xf32>, vector<2x32xf32>, vector<1x32xf32> -> vector<1x32xf32>
      %c0_34 = arith.constant 0 : index
      %c0_35 = arith.constant 0 : index
      %28 = vector.load %arg5[%c0_34, %c0_35] : memref<32x2xf32, #tpu.memory_space<vmem>>, vector<32x2xf32>
      %cst_36 = arith.constant dense<0.000000e+00> : vector<1x2xf32>
      %29 = tpu.matmul %21, %28, %cst_36 {dimension_numbers = #tpu.dot_dimension_numbers<[1], [0], [0], [1], [0, 0, 1, 1], [], []>} : vector<1x32xf32>, vector<32x2xf32>, vector<1x2xf32> -> vector<1x2xf32>
      %cst_37 = arith.constant 0.000000e+00 : f32
      %30 = vector.broadcast %cst_37 : f32 to vector<1x2xf32>
      %31 = arith.maximumf %29, %30 : vector<1x2xf32>
      %c0_38 = arith.constant 0 : index
      %c0_39 = arith.constant 0 : index
      %32 = vector.load %arg6[%c0_38, %c0_39] : memref<2x32xf32, #tpu.memory_space<vmem>>, vector<2x32xf32>
      %cst_40 = arith.constant dense<0.000000e+00> : vector<1x32xf32>
      %33 = tpu.matmul %31, %32, %cst_40 {dimension_numbers = #tpu.dot_dimension_numbers<[1], [0], [0], [1], [0, 0, 1, 1], [], []>} : vector<1x2xf32>, vector<2x32xf32>, vector<1x32xf32> -> vector<1x32xf32>
      %34 = arith.addf %27, %33 : vector<1x32xf32>
      %35 = arith.negf %34 : vector<1x32xf32>
      %36 = math.exp %35 : vector<1x32xf32>
      %cst_41 = arith.constant 1.000000e+00 : f32
      %37 = vector.broadcast %cst_41 : f32 to vector<1x32xf32>
      %38 = arith.addf %37, %36 : vector<1x32xf32>
      %39 = arith.divf %37, %38 : vector<1x32xf32>
      %40 = vector.shape_cast %39 : vector<1x32xf32> to vector<1x1x32xf32>
      %c0_42 = arith.constant 0 : index
      %c0_43 = arith.constant 0 : index
      %c0_44 = arith.constant 0 : index
      %41 = vector.load %arg7[%c0_42, %c0_43, %c0_44] : memref<1x1x32xf32, #tpu.memory_space<vmem>>, vector<1x1x32xf32>
      tpu.vector_store %arg7[%c0_42, %c0_43, %c0_44], %40 {strides = array<i32>} : memref<1x1x32xf32, #tpu.memory_space<vmem>>, vector<1x1x32xf32>,
    } else {
    }
    return
  }
  func.func @transform_0(%arg0: i32, %arg1: i32) -> (i32, i32, i32) {
    %c0_i32 = arith.constant 0 : i32
    %c0_i32_0 = arith.constant 0 : i32
    return %arg0, %c0_i32, %arg1 : i32, i32, i32
  }
  func.func @transform_1(%arg0: i32, %arg1: i32) -> (i32, i32) {
    %c0_i32 = arith.constant 0 : i32
    %c0_i32_0 = arith.constant 0 : i32
    %c0_i32_1 = arith.constant 0 : i32
    return %c0_i32, %c0_i32_0 : i32, i32
  }
  func.func @transform_2(%arg0: i32, %arg1: i32) -> (i32, i32) {
    %c0_i32 = arith.constant 0 : i32
    %c0_i32_0 = arith.constant 0 : i32
    %c0_i32_1 = arith.constant 0 : i32
    return %c0_i32, %c0_i32_0 : i32, i32
  }
  func.func @transform_3(%arg0: i32, %arg1: i32) -> (i32, i32) {
    %c0_i32 = arith.constant 0 : i32
    %c0_i32_0 = arith.constant 0 : i32
    %c0_i32_1 = arith.constant 0 : i32
    return %c0_i32, %c0_i32_0 : i32, i32
  }
  func.func @transform_4(%arg0: i32, %arg1: i32) -> (i32, i32) {
    %c0_i32 = arith.constant 0 : i32
    %c0_i32_0 = arith.constant 0 : i32
    %c0_i32_1 = arith.constant 0 : i32
    return %c0_i32, %c0_i32_0 : i32, i32
  }
  func.func @transform_5(%arg0: i32, %arg1: i32) -> (i32, i32, i32) {
    %c0_i32 = arith.constant 0 : i32
    %c0_i32_0 = arith.constant 0 : i32
    %c0_i32_1 = arith.constant 0 : i32
    return %arg0, %c0_i32, %c0_i32_0 : i32, i32, i32
  }
}

</mosaic_0001>

<llo_original>
// kernel: tpu_custom_call.1
$region0: #{tpu_custom_call.1}
  #allocation0 [shape = 'u32[]', space=smem, size = 0x4, offset = 0x4, fixed_abs, tag = 'smem constant byte address 0x4 - core index']
  #allocation1 [shape = 'u32[144,128]{1,0:T(1,128)}', space=vmem, size = 0x12000, scoped, tag = 'internal scratch']
  #allocation2 [shape = 'f32[1,32,128]{2,1,0:T(8,128)}', space=vmem, size = 0x4000, scoped, tag = 'scratch operand']
  #allocation3 [shape = 'f32[1,32,128]{2,1,0:T(8,128)}', space=vmem, size = 0x4000, scoped, tag = 'scratch operand']
  %s0 = inlined_call_operand.hbm [shape: f32[2,32,256], index: 0, kind: input, shape index: {}]
  %s1 = inlined_call_operand.vmem [shape: f32[32,2], index: 1, kind: input, shape index: {}]
  %s2 = inlined_call_operand.vmem [shape: f32[2,32], index: 2, kind: input, shape index: {}]
  %s3 = inlined_call_operand.vmem [shape: f32[32,2], index: 3, kind: input, shape index: {}]
  %s4 = inlined_call_operand.vmem [shape: f32[2,32], index: 4, kind: input, shape index: {}]
  %s5 = inlined_call_operand.hbm [shape: f32[2,1,32], index: 5, kind: output, shape index: {}]
  %s6 = sld [smem:[#allocation0]]
  $region65: #{tpu_custom_call.1} parent=0
    _
  %s8 = ssub.s32 1, %s6
  %s9 = scalar_select 0, %s8, %s6
  $region1: #{tpu_custom_call.1} parent=0
    #allocation4 [shape = 'u8[65536]{0}', space=vmem, size = 0x10000, scoped, tag = 'input window, operand 0']
    #allocation5 [shape = 's32[2]{0}', space=sflag, size = 0x8, scoped, tag = 'scoped memory for tpu_custom_call.1']
    #allocation6 [shape = 's32[2]{0}', space=sflag, size = 0x8, scoped, tag = 'scoped memory for tpu_custom_call.1']
    #allocation7 [shape = 'u8[1024]{0}', space=vmem, size = 0x400, scoped, tag = 'output window, operand 0']
    %10 = vsyncpa [#allocation5], 0
    %s11 = scalar_lea.sflag [#allocation5], 1
    %12 = vsyncpa %s11, 0
    %13 = vsyncpa [#allocation6], 0
    %s14 = scalar_lea.sflag [#allocation6], 1
    %15 = vsyncpa %s14, 0
    loop: start=0, step=1, limit=4
    $region2: #{tpu_custom_call.1} parent=1 // loop_pre_header
      _
    $region3: #{tpu_custom_call.1} parent=1 // loop_header
      %s17 = sphi 0, %s21
      %p18 = scmp.ge.s32.totalorder %s17, 4
      %s24 = sphi 0, %s36
      %s25 = sphi 0, %s32
      %s26 = sphi 0, %s24
      %s27 = sphi 0, %s25
      %s28 = sphi 0, %s26
      %s29 = sphi 0, %s27
      %s41 = sphi 0, %s43
      %s44 = sphi 0, %s41
      %s45 = sphi 0, %s44
      %s61 = sphi 0, %s45
      %s65 = sphi 0, %s65
      %s67 = sphi 0, %s65
      %s68 = sphi 0, %s67
      %s82 = sphi 0, %s68
      %s86 = sphi 0, %s86
      %s88 = sphi 0, %s86
      %s89 = sphi 0, %s88
      %s103 = sphi 0, %s89
      %s107 = sphi 0, %s107
      %s109 = sphi 0, %s107
      %s110 = sphi 0, %s109
      %s124 = sphi 0, %s110
      %s128 = sphi 0, %s128
      %s130 = sphi 0, %s128
      %s131 = sphi 0, %s130
      %s145 = sphi 0, %s131
      %s151 = sphi 0, %s153
      %s154 = sphi 0, %s151
      %s155 = sphi 0, %s154
      %s171 = sphi 0, %s155
    $region4: #{tpu_custom_call.1} parent=1 // loop_header_branch
      %20 = sbr.rel (%p18) target = $region8
    $region5: #{tpu_custom_call.1} parent=1 // loop_body
      %s22 = ssub.s32 %s17, 1
      %s23 = ssub.s32 %s17, 2
      %s30 = sadd.s32 1, %s25
      %p31 = scmp.ge.s32.totalorder %s30, 1
      %s32 = scalar_select %p31, 0, %s30
      %s33 = sadd.s32 1, %s24
      %s34 = scalar_select %p31, %s33, %s24
      %p35 = scmp.ge.s32.totalorder %s34, 2
      %s36 = scalar_select %p35, 0, %s34
      %s37 = ssub.s32 %s24, %s36
      %s38 = ssub.s32 %s25, %s32
      %s39 = sor.u32 %s37, %s38
      %p40 = scmp.eq.s32.totalorder %s39, 0
      %s42 = sadd.s32 %s41, 1
      %s43 = scalar_select %p40, %s41, %s42
      %p46 = pneg %p40
      %p47 = scmp.eq.s32.totalorder %s17, 1
      %p48 = por %p46, %p47
      %p49 = scmp.ne.s32.totalorder %s41, %s44
      %p50 = scmp.eq.s32.totalorder %s17, 0
      %p51 = por %p49, %p50
      %p52 = scmp.ne.s32.totalorder %s41, %s44
      %p53 = scmp.eq.s32.totalorder %s22, 1
      %p54 = por %p52, %p53
      %p55 = scmp.ne.s32.totalorder %s44, %s45
      %p56 = scmp.eq.s32.totalorder %s22, 0
      %p57 = por %p55, %p56
      %p58 = scmp.ne.s32.totalorder %s44, %s45
      %p59 = scmp.eq.s32.totalorder %s23, 1
      %p60 = por %p58, %p59
      %p62 = scmp.ne.s32.totalorder %s45, %s61
      %p63 = scmp.eq.s32.totalorder %s23, 0
      %p64 = por %p62, %p63
      %s66 = sadd.s32 %s65, 1
      %p69 = scmp.eq.s32.totalorder %s17, 1
      %p70 = scmp.ne.s32.totalorder %s65, %s67
      %p71 = scmp.eq.s32.totalorder %s17, 0
      %p72 = por %p70, %p71
      %p73 = scmp.ne.s32.totalorder %s65, %s67
      %p74 = scmp.eq.s32.totalorder %s22, 1
      %p75 = por %p73, %p74
      %p76 = scmp.ne.s32.totalorder %s67, %s68
      %p77 = scmp.eq.s32.totalorder %s22, 0
      %p78 = por %p76, %p77
      %p79 = scmp.ne.s32.totalorder %s67, %s68
      %p80 = scmp.eq.s32.totalorder %s23, 1
      %p81 = por %p79, %p80
      %p83 = scmp.ne.s32.totalorder %s68, %s82
      %p84 = scmp.eq.s32.totalorder %s23, 0
      %p85 = por %p83, %p84
      %s87 = sadd.s32 %s86, 1
      %p90 = scmp.eq.s32.totalorder %s17, 1
      %p91 = scmp.ne.s32.totalorder %s86, %s88
      %p92 = scmp.eq.s32.totalorder %s17, 0
      %p93 = por %p91, %p92
      %p94 = scmp.ne.s32.totalorder %s86, %s88
      %p95 = scmp.eq.s32.totalorder %s22, 1
      %p96 = por %p94, %p95
      %p97 = scmp.ne.s32.totalorder %s88, %s89
      %p98 = scmp.eq.s32.totalorder %s22, 0
      %p99 = por %p97, %p98
      %p100 = scmp.ne.s32.totalorder %s88, %s89
      %p101 = scmp.eq.s32.totalorder %s23, 1
      %p102 = por %p100, %p101
      %p104 = scmp.ne.s32.totalorder %s89, %s103
      %p105 = scmp.eq.s32.totalorder %s23, 0
      %p106 = por %p104, %p105
      %s108 = sadd.s32 %s107, 1
      %p111 = scmp.eq.s32.totalorder %s17, 1
      %p112 = scmp.ne.s32.totalorder %s107, %s109
      %p113 = scmp.eq.s32.totalorder %s17, 0
      %p114 = por %p112, %p113
      %p115 = scmp.ne.s32.totalorder %s107, %s109
      %p116 = scmp.eq.s32.totalorder %s22, 1
      %p117 = por %p115, %p116
      %p118 = scmp.ne.s32.totalorder %s109, %s110
      %p119 = scmp.eq.s32.totalorder %s22, 0
      %p120 = por %p118, %p119
      %p121 = scmp.ne.s32.totalorder %s109, %s110
      %p122 = scmp.eq.s32.totalorder %s23, 1
      %p123 = por %p121, %p122
      %p125 = scmp.ne.s32.totalorder %s110, %s124
      %p126 = scmp.eq.s32.totalorder %s23, 0
      %p127 = por %p125, %p126
      %s129 = sadd.s32 %s128, 1
      %p132 = scmp.eq.s32.totalorder %s17, 1
      %p133 = scmp.ne.s32.totalorder %s128, %s130
      %p134 = scmp.eq.s32.totalorder %s17, 0
      %p135 = por %p133, %p134
      %p136 = scmp.ne.s32.totalorder %s128, %s130
      %p137 = scmp.eq.s32.totalorder %s22, 1
      %p138 = por %p136, %p137
      %p139 = scmp.ne.s32.totalorder %s130, %s131
      %p140 = scmp.eq.s32.totalorder %s22, 0
      %p141 = por %p139, %p140
      %p142 = scmp.ne.s32.totalorder %s130, %s131
      %p143 = scmp.eq.s32.totalorder %s23, 1
      %p144 = por %p142, %p143
      %p146 = scmp.ne.s32.totalorder %s131, %s145
      %p147 = scmp.eq.s32.totalorder %s23, 0
      %p148 = por %p146, %p147
      %s149 = ssub.s32 %s24, %s36
      %p150 = scmp.eq.s32.totalorder %s149, 0
      %s152 = sadd.s32 %s151, 1
      %s153 = scalar_select %p150, %s151, %s152
      %p156 = pneg %p150
      %p157 = scmp.eq.s32.totalorder %s17, 1
      %p158 = por %p156, %p157
      %p159 = scmp.ne.s32.totalorder %s151, %s154
      %p160 = scmp.eq.s32.totalorder %s17, 0
      %p161 = por %p159, %p160
      %p162 = scmp.ne.s32.totalorder %s151, %s154
      %p163 = scmp.eq.s32.totalorder %s22, 1
      %p164 = por %p162, %p163
      %p165 = scmp.ne.s32.totalorder %s154, %s155
      %p166 = scmp.eq.s32.totalorder %s22, 0
      %p167 = por %p165, %p166
      %p168 = scmp.ne.s32.totalorder %s154, %s155
      %p169 = scmp.eq.s32.totalorder %s23, 1
      %p170 = por %p168, %p169
      %p172 = scmp.ne.s32.totalorder %s155, %s171
      %p173 = scmp.eq.s32.totalorder %s23, 0
      %p174 = por %p172, %p173
      %p175 = scmp.le.s32.totalorder 1, %s17
      %p176 = scmp.lt.s32.totalorder %s17, 3
      %p177 = pnand %p175, %p176
      %p178 = pneg %p177
      // Predicated region
      $region9: #{tpu_custom_call.1} parent=5 // pred_check
        _
      $region10: #{tpu_custom_call.1} parent=5 // pred_check_branch
        %180 = sbr.rel (%p177) target = $region12
      $region11: #{tpu_custom_call.1} parent=5 // pred_region
        %s181 = ssub.s32 %s17, 1
        // Predicated region
        $region13: #{tpu_custom_call.1} parent=11 // pred_check
          %p182 = pneg %p78
        $region14: #{tpu_custom_call.1} parent=11 // pred_check_branch
          %184 = sbr.rel (%p182) target = $region16
        $region15: #{tpu_custom_call.1} parent=11 // pred_region
          _
        $region16: #{tpu_custom_call.1} parent=11 // pred_fallthru
          _
        // Predicated region
        $region17: #{tpu_custom_call.1} parent=11 // pred_check
          %p185 = pneg %p99
        $region18: #{tpu_custom_call.1} parent=11 // pred_check_branch
          %187 = sbr.rel (%p185) target = $region20
        $region19: #{tpu_custom_call.1} parent=11 // pred_region
          _
        $region20: #{tpu_custom_call.1} parent=11 // pred_fallthru
          _
        // Predicated region
        $region21: #{tpu_custom_call.1} parent=11 // pred_check
          %p188 = pneg %p120
        $region22: #{tpu_custom_call.1} parent=11 // pred_check_branch
          %190 = sbr.rel (%p188) target = $region24
        $region23: #{tpu_custom_call.1} parent=11 // pred_region
          _
        $region24: #{tpu_custom_call.1} parent=11 // pred_fallthru
          _
        // Predicated region
        $region25: #{tpu_custom_call.1} parent=11 // pred_check
          %p191 = pneg %p141
        $region26: #{tpu_custom_call.1} parent=11 // pred_check_branch
          %193 = sbr.rel (%p191) target = $region28
        $region27: #{tpu_custom_call.1} parent=11 // pred_region
          _
        $region28: #{tpu_custom_call.1} parent=11 // pred_fallthru
          _
      $region12: #{tpu_custom_call.1} parent=5 // pred_fallthru
        _
      %p194 = scmp.lt.s32.totalorder %s17, 2
      // Predicated region
      $region29: #{tpu_custom_call.1} parent=5 // pred_check
        %p195 = pneg %p194
      $region30: #{tpu_custom_call.1} parent=5 // pred_check_branch
        %197 = sbr.rel (%p195) target = $region32
      $region31: #{tpu_custom_call.1} parent=5 // pred_region
        // Predicated region
        $region33: #{tpu_custom_call.1} parent=31 // pred_check
          %p198 = pneg %p51
        $region34: #{tpu_custom_call.1} parent=31 // pred_check_branch
          %200 = sbr.rel (%p198) target = $region36
        $region35: #{tpu_custom_call.1} parent=31 // pred_region
          %s201 = sand.u32 %s41, 1
          %s202 = scalar_lea.sflag [#allocation5], %s201
          %s203 = sand.u32 %s41, 1
          %s204 = smul.addr %s203, 64
          %s205 = scalar_lea.vmem [#allocation4], %s204
          %s206 = smul.u32 2, %s25
          %s208 = ssub.s32 1024, 1024
          %209 = vsyncadd %s202, %s208
          %s210 = smul.addr %s24, 8
          %s211 = sadd.s32 %s206, %s210
          %s212 = smul.addr %s211, 128
          %s213 = scalar_lea.hbm %s0, %s212
          %s214 = sshll.u32 %s205, 4
          %s215 = int_to_ptr.vmem [resolvable:$true] %s214
          %220 = dma.hbm_to_vmem [thread:$0]  %s213, 1024, %s215, %s202, 256, 256, 16
        $region36: #{tpu_custom_call.1} parent=31 // pred_fallthru
          _
      $region32: #{tpu_custom_call.1} parent=5 // pred_fallthru
        _
      %p221 = scmp.le.s32.totalorder 1, %s17
      %p222 = scmp.lt.s32.totalorder %s17, 3
      %p223 = pnand %p221, %p222
      %p224 = pneg %p223
      // Predicated region
      $region37: #{tpu_custom_call.1} parent=5 // pred_check
        _
      $region38: #{tpu_custom_call.1} parent=5 // pred_check_branch
        %226 = sbr.rel (%p223) target = $region40
      $region39: #{tpu_custom_call.1} parent=5 // pred_region
        %s227 = ssub.s32 %s17, 1
        %s228 = sand.u32 %s44, 1
        %s229 = scalar_lea.sflag [#allocation5], %s228
        %s230 = sand.u32 %s44, 1
        %s231 = smul.addr %s230, 64
        %s232 = scalar_lea.vmem [#allocation4], %s231
        // Predicated region
        $region41: #{tpu_custom_call.1} parent=39 // pred_check
          %p233 = pneg %p57
        $region42: #{tpu_custom_call.1} parent=39 // pred_check_branch
          %235 = sbr.rel (%p233) target = $region44
        $region43: #{tpu_custom_call.1} parent=39 // pred_region
          %236 = dma.done %s229, 1024
        $region44: #{tpu_custom_call.1} parent=39 // pred_fallthru
          _
        %s237 = sand.u32 %s44, 1
        %s238 = scalar_lea.sflag [#allocation5], %s237
        %s239 = sand.u32 %s44, 1
        %s240 = smul.addr %s239, 64
        %s241 = scalar_lea.vmem [#allocation4], %s240
        %p242 = pneg %p57
        %p243 = pneg %p54
        %p244 = pneg %p78
        %p245 = pneg %p75
        %p246 = pneg %p99
        %p247 = pneg %p96
        %p248 = pneg %p120
        %p249 = pneg %p117
        %p250 = pneg %p141
        %p251 = pneg %p138
        %p252 = pneg %p167
        %p253 = pneg %p164
        %s254 = sand.u32 %s154, 1
        %s255 = scalar_lea.sflag [#allocation6], %s254
        %s256 = sand.u32 %s154, 1
        %s257 = scalar_lea.vmem [#allocation7], %s256
        %s258 = smul.u32 2, %s27
        %p259 = scmp.eq.s32.totalorder %s27, 0
        // Predicated region
        $region45: #{tpu_custom_call.1} parent=39 // pred_check
          %p260 = pneg %p259
        $region46: #{tpu_custom_call.1} parent=39 // pred_check_branch
          %262 = sbr.rel (%p260) target = $region48
        $region47: #{tpu_custom_call.1} parent=39 // pred_region
          %263 = vst [vmem:[#allocation2] sm:$0xff] 0.0
          %264 = vst [vmem:[#allocation2 + $0x8] sm:$0xff] 0.0
          %265 = vst [vmem:[#allocation2 + $0x10] sm:$0xff] 0.0
          %266 = vst [vmem:[#allocation2 + $0x18] sm:$0xff] 0.0
          %267 = vst [vmem:[#allocation3] sm:$0xff] -inf
          %268 = vst [vmem:[#allocation3 + $0x8] sm:$0xff] -inf
          %269 = vst [vmem:[#allocation3 + $0x10] sm:$0xff] -inf
          %270 = vst [vmem:[#allocation3 + $0x18] sm:$0xff] -inf
        $region48: #{tpu_custom_call.1} parent=39 // pred_fallthru
          _
        %v271 = vld [vmem:[%s232] sm:$0xff]
        %v272 = vld [vmem:[%s232 + $0x10] sm:$0xff]
        %v273 = vld [vmem:[%s232 + $0x20] sm:$0xff]
        %v274 = vld [vmem:[%s232 + $0x30] sm:$0xff]
        %v275 = vld [vmem:[%s232 + $0x8] sm:$0xff]
        %v276 = vld [vmem:[%s232 + $0x18] sm:$0xff]
        %v277 = vld [vmem:[%s232 + $0x28] sm:$0xff]
        %v278 = vld [vmem:[%s232 + $0x38] sm:$0xff]
        %v279 = vadd.f32 %v271, %v275
        %v280 = vadd.f32 %v272, %v276
        %v281 = vadd.f32 %v273, %v277
        %v282 = vadd.f32 %v274, %v278
        %v283 = vmax.f32 %v271, %v275
        %v284 = vmax.f32 %v272, %v276
        %v285 = vmax.f32 %v273, %v277
        %v286 = vmax.f32 %v274, %v278
        %v287 = vld [vmem:[#allocation2] sm:$0xff]
        %v288 = vld [vmem:[#allocation2 + $0x8] sm:$0xff]
        %v289 = vld [vmem:[#allocation2 + $0x10] sm:$0xff]
        %v290 = vld [vmem:[#allocation2 + $0x18] sm:$0xff]
        %v291 = vadd.f32 %v287, %v279
        %v292 = vadd.f32 %v288, %v280
        %v293 = vadd.f32 %v289, %v281
        %v294 = vadd.f32 %v290, %v282
        %295 = vst [vmem:[#allocation2] sm:$0xff] %v291
        %296 = vst [vmem:[#allocation2 + $0x8] sm:$0xff] %v292
        %297 = vst [vmem:[#allocation2 + $0x10] sm:$0xff] %v293
        %298 = vst [vmem:[#allocation2 + $0x18] sm:$0xff] %v294
        %v299 = vld [vmem:[#allocation3] sm:$0xff]
        %v300 = vld [vmem:[#allocation3 + $0x8] sm:$0xff]
        %v301 = vld [vmem:[#allocation3 + $0x10] sm:$0xff]
        %v302 = vld [vmem:[#allocation3 + $0x18] sm:$0xff]
        %v303 = vmax.f32 %v299, %v283
        %v304 = vmax.f32 %v300, %v284
        %v305 = vmax.f32 %v301, %v285
        %v306 = vmax.f32 %v302, %v286
        %307 = vst [vmem:[#allocation3] sm:$0xff] %v303
        %308 = vst [vmem:[#allocation3 + $0x8] sm:$0xff] %v304
        %309 = vst [vmem:[#allocation3 + $0x10] sm:$0xff] %v305
        %310 = vst [vmem:[#allocation3 + $0x18] sm:$0xff] %v306
        // Predicated region
        $region49: #{tpu_custom_call.1} parent=39 // pred_check
          %p311 = pneg %p259
        $region50: #{tpu_custom_call.1} parent=39 // pred_check_branch
          %313 = sbr.rel (%p311) target = $region52
        $region51: #{tpu_custom_call.1} parent=39 // pred_region
          %v314 = vld [vmem:[#allocation2] sm:$0xff]
          %v315 = vld [vmem:[#allocation2 + $0x8] sm:$0xff]
          %v316 = vld [vmem:[#allocation2 + $0x10] sm:$0xff]
          %v317 = vld [vmem:[#allocation2 + $0x18] sm:$0xff]
          %318 = vadd.xlane.f32.xlu0 %v314
          %v319 = vpop.xlane.xlu0 %318
          %320 = vadd.xlane.f32.xlu0 %v315
          %v321 = vpop.xlane.xlu0 %320
          %322 = vadd.xlane.f32.xlu0 %v316
          %v323 = vpop.xlane.xlu0 %322
          %324 = vadd.xlane.f32.xlu0 %v317
          %v325 = vpop.xlane.xlu0 %324
          %v326 = vmul.f32 %v319, 0.00390625
          %v327 = vmul.f32 %v321, 0.00390625
          %v328 = vmul.f32 %v323, 0.00390625
          %v329 = vmul.f32 %v325, 0.00390625
          %v330 = vld [vmem:[#allocation3] sm:$0xff]
          %v331 = vld [vmem:[#allocation3 + $0x8] sm:$0xff]
          %v332 = vld [vmem:[#allocation3 + $0x10] sm:$0xff]
          %v333 = vld [vmem:[#allocation3 + $0x18] sm:$0xff]
          %334 = vmax.xlane.f32.xlu0 %v330
          %v335 = vpop.xlane.xlu0 %334
          %336 = vmax.xlane.f32.xlu0 %v331
          %v337 = vpop.xlane.xlu0 %336
          %338 = vmax.xlane.f32.xlu0 %v332
          %v339 = vpop.xlane.xlu0 %338
          %340 = vmax.xlane.f32.xlu0 %v333
          %v341 = vpop.xlane.xlu0 %340
          %v342 = vld [vmem:[%s1] sm:$0xff]
          %v343 = vld [vmem:[%s1 + $0x8] sm:$0xff]
          %v344 = vld [vmem:[%s1 + $0x10] sm:$0xff]
          %v345 = vld [vmem:[%s1 + $0x18] sm:$0xff]
          %v350 = vlaneseq
          %v351 = vand.u32 %v350, 127
          %v352 = vlaneseq
          %v353 = vshrl.u32 %v352, 7
          %v354 = vsub.s32 %v351, %v353
          %v355 = vrot.slane %v326, %v354
          %v356 = vadd.s32 %v351, 4294967288
          %v357 = vlaneseq
          %v358 = vshrl.u32 %v357, 7
          %v359 = vsub.s32 %v356, %v358
          %v360 = vrot.slane %v327, %v359
          %vm361 = vcmask 130112
          %v362 = vsel %vm361, %v360, %v355
          %v363 = vadd.s32 %v351, 4294967280
          %v364 = vlaneseq
          %v365 = vshrl.u32 %v364, 7
          %v366 = vsub.s32 %v363, %v365
          %v367 = vrot.slane %v328, %v366
          %vm368 = vcmask 195712
          %v369 = vsel %vm368, %v367, %v362
          %v370 = vadd.s32 %v351, 4294967272
          %v371 = vlaneseq
          %v372 = vshrl.u32 %v371, 7
          %v373 = vsub.s32 %v370, %v372
          %v374 = vrot.slane %v329, %v373
          %vm375 = vcmask 261312
          %v376 = vsel %vm375, %v374, %v369
          %vm377 = vcmask 261120
          %v378 = vsel %vm377, %v376, 0
          %380 = vmatprep.subr.mxu0 0.0
          %381 = vmatpush1.msra.mxu0 0.0
          %382 = vmatprep.subr.mxu0 0.0
          %383 = vmatpush1.msra.mxu0 0.0
          %384 = vmatprep.subr.mxu0 0.0
          %385 = vmatpush1.msra.mxu0 0.0
          %386 = vmatprep.subr.mxu0 0.0
          %387 = vmatpush1.msra.mxu0 0.0
          %388 = vmatprep.subr.mxu0 0.0
          %389 = vmatpush1.msra.mxu0 0.0
          %390 = vmatprep.subr.mxu0 0.0
          %391 = vmatpush1.msra.mxu0 0.0
          %392 = vmatprep.subr.mxu0 0.0
          %393 = vmatpush1.msra.mxu0 0.0
          %394 = vmatprep.subr.mxu0 0.0
          %395 = vmatpush1.msra.mxu0 0.0
          %396 = vmatprep.subr.mxu0 0.0
          %397 = vmatpush1.msra.mxu0 0.0
          %398 = vmatprep.subr.mxu0 0.0
          %399 = vmatpush1.msra.mxu0 0.0
          %400 = vmatprep.subr.mxu0 0.0
          %401 = vmatpush1.msra.mxu0 0.0
          %402 = vmatprep.subr.mxu0 0.0
          %403 = vmatpush1.msra.mxu0 0.0
          %404 = vmatprep.subr.mxu0 0.0
          %405 = vmatpush1.msra.mxu0 %v345
          %406 = vmatprep.subr.mxu0 0.0
          %407 = vmatpush1.msra.mxu0 %v344
          %408 = vmatprep.subr.mxu0 0.0
          %409 = vmatpush1.msra.mxu0 %v343
          %410 = vmatprep.subr.mxu0 0.0
          %411 = vmatpush1.msra.mxu0 %v342
          %412 = vmatprep.subr.mxu0 0.0
          %413 = vmatpush2.msra.mxu0 0.0
          %414 = vmatprep.subr.mxu0 0.0
          %415 = vmatpush2.msra.mxu0 0.0
          %416 = vmatprep.subr.mxu0 0.0
          %417 = vmatpush2.msra.mxu0 0.0
          %418 = vmatprep.subr.mxu0 0.0
          %419 = vmatpush2.msra.mxu0 0.0
          %420 = vmatprep.subr.mxu0 0.0
          %421 = vmatpush2.msra.mxu0 0.0
          %422 = vmatprep.subr.mxu0 0.0
          %423 = vmatpush2.msra.mxu0 0.0
          %424 = vmatprep.subr.mxu0 0.0
          %425 = vmatpush2.msra.mxu0 0.0
          %426 = vmatprep.subr.mxu0 0.0
          %427 = vmatpush2.msra.mxu0 0.0
          %428 = vmatprep.subr.mxu0 0.0
          %429 = vmatpush2.msra.mxu0 0.0
          %430 = vmatprep.subr.mxu0 0.0
          %431 = vmatpush2.msra.mxu0 0.0
          %432 = vmatprep.subr.mxu0 0.0
          %433 = vmatpush2.msra.mxu0 0.0
          %434 = vmatprep.subr.mxu0 0.0
          %435 = vmatpush2.msra.mxu0 0.0
          %436 = vmatprep.subr.mxu0 0.0
          %437 = vmatpush2.msra.mxu0 0.0
          %438 = vmatprep.subr.mxu0 0.0
          %439 = vmatpush2.msra.mxu0 0.0
          %440 = vmatprep.subr.mxu0 0.0
          %441 = vmatpush2.msra.mxu0 0.0
          %442 = vmatprep.subr.mxu0 0.0
          %443 = vmatpush2.msra.mxu0 0.0
          %444 = vmatprep.mubr.f32.mxu0 0.0
          %445 = vmatmul.mubr.f32.gmra.mxu0 %v378
          %v446 = vpop.f32.mrf.mxu0
          %v447 = vadd.f32 0.0, %v446
          %v448 = vpop.f32.mrf.mxu0
          %449 = vdwg.mxu0
          %v450 = vmax.f32 %v447, 0.0
          %v451 = vld [vmem:[%s2] sm:$0x3]
          %v452 = vld [vmem:[%s3] sm:$0xff]
          %v453 = vld [vmem:[%s3 + $0x8] sm:$0xff]
          %v454 = vld [vmem:[%s3 + $0x10] sm:$0xff]
          %v455 = vld [vmem:[%s3 + $0x18] sm:$0xff]
          %v460 = vlaneseq
          %v461 = vshrl.u32 %v460, 7
          %v462 = vsub.s32 %v351, %v461
          %v463 = vrot.slane %v335, %v462
          %v464 = vlaneseq
          %v465 = vshrl.u32 %v464, 7
          %v466 = vsub.s32 %v356, %v465
          %v467 = vrot.slane %v337, %v466
          %v468 = vsel %vm361, %v467, %v463
          %v469 = vlaneseq
          %v470 = vshrl.u32 %v469, 7
          %v471 = vsub.s32 %v363, %v470
          %v472 = vrot.slane %v339, %v471
          %v473 = vsel %vm368, %v472, %v468
          %v474 = vlaneseq
          %v475 = vshrl.u32 %v474, 7
          %v476 = vsub.s32 %v370, %v475
          %v477 = vrot.slane %v341, %v476
          %v478 = vsel %vm375, %v477, %v473
          %v479 = vsel %vm377, %v478, 0
          %481 = vmatprep.subr.mxu0 0.0
          %482 = vmatpush1.msra.mxu0 0.0
          %483 = vmatprep.subr.mxu0 0.0
          %484 = vmatpush1.msra.mxu0 0.0
          %485 = vmatprep.subr.mxu0 0.0
          %486 = vmatpush1.msra.mxu0 0.0
          %487 = vmatprep.subr.mxu0 0.0
          %488 = vmatpush1.msra.mxu0 0.0
          %489 = vmatprep.subr.mxu0 0.0
          %490 = vmatpush1.msra.mxu0 0.0
          %491 = vmatprep.subr.mxu0 0.0
          %492 = vmatpush1.msra.mxu0 0.0
          %493 = vmatprep.subr.mxu0 0.0
          %494 = vmatpush1.msra.mxu0 0.0
          %495 = vmatprep.subr.mxu0 0.0
          %496 = vmatpush1.msra.mxu0 0.0
          %497 = vmatprep.subr.mxu0 0.0
          %498 = vmatpush1.msra.mxu0 0.0
          %499 = vmatprep.subr.mxu0 0.0
          %500 = vmatpush1.msra.mxu0 0.0
          %501 = vmatprep.subr.mxu0 0.0
          %502 = vmatpush1.msra.mxu0 0.0
          %503 = vmatprep.subr.mxu0 0.0
          %504 = vmatpush1.msra.mxu0 0.0
          %505 = vmatprep.subr.mxu0 0.0
          %506 = vmatpush1.msra.mxu0 %v455
          %507 = vmatprep.subr.mxu0 0.0
          %508 = vmatpush1.msra.mxu0 %v454
          %509 = vmatprep.subr.mxu0 0.0
          %510 = vmatpush1.msra.mxu0 %v453
          %511 = vmatprep.subr.mxu0 0.0
          %512 = vmatpush1.msra.mxu0 %v452
          %513 = vmatprep.subr.mxu0 0.0
          %514 = vmatpush2.msra.mxu0 0.0
          %515 = vmatprep.subr.mxu0 0.0
          %516 = vmatpush2.msra.mxu0 0.0
          %517 = vmatprep.subr.mxu0 0.0
          %518 = vmatpush2.msra.mxu0 0.0
          %519 = vmatprep.subr.mxu0 0.0
          %520 = vmatpush2.msra.mxu0 0.0
          %521 = vmatprep.subr.mxu0 0.0
          %522 = vmatpush2.msra.mxu0 0.0
          %523 = vmatprep.subr.mxu0 0.0
          %524 = vmatpush2.msra.mxu0 0.0
          %525 = vmatprep.subr.mxu0 0.0
          %526 = vmatpush2.msra.mxu0 0.0
          %527 = vmatprep.subr.mxu0 0.0
          %528 = vmatpush2.msra.mxu0 0.0
          %529 = vmatprep.subr.mxu0 0.0
          %530 = vmatpush2.msra.mxu0 0.0
          %531 = vmatprep.subr.mxu0 0.0
          %532 = vmatpush2.msra.mxu0 0.0
          %533 = vmatprep.subr.mxu0 0.0
          %534 = vmatpush2.msra.mxu0 0.0
          %535 = vmatprep.subr.mxu0 0.0
          %536 = vmatpush2.msra.mxu0 0.0
          %537 = vmatprep.subr.mxu0 0.0
          %538 = vmatpush2.msra.mxu0 0.0
          %539 = vmatprep.subr.mxu0 0.0
          %540 = vmatpush2.msra.mxu0 0.0
          %541 = vmatprep.subr.mxu0 0.0
          %542 = vmatpush2.msra.mxu0 0.0
          %543 = vmatprep.subr.mxu0 0.0
          %544 = vmatpush2.msra.mxu0 0.0
          %545 = vmatprep.mubr.f32.mxu0 0.0
          %546 = vmatmul.mubr.f32.gmra.mxu0 %v479
          %v547 = vpop.f32.mrf.mxu0
          %v548 = vadd.f32 0.0, %v547
          %v549 = vpop.f32.mrf.mxu0
          %550 = vdwg.mxu0
          %v551 = vmax.f32 %v548, 0.0
          %v552 = vld [vmem:[%s4] sm:$0x3]
          %vm553 = vcmask 15360
          %v555 = vsel %vm553, %v551, 0
          %vm557 = vcmask 1041408
          %v559 = vsel %vm557, %v552, 0
          %561 = vmatprep.subr.mxu0 0.0
          %562 = vmatpush1.msra.mxu0 0.0
          %563 = vmatprep.subr.mxu0 0.0
          %564 = vmatpush1.msra.mxu0 0.0
          %565 = vmatprep.subr.mxu0 0.0
          %566 = vmatpush1.msra.mxu0 0.0
          %567 = vmatprep.subr.mxu0 0.0
          %568 = vmatpush1.msra.mxu0 0.0
          %569 = vmatprep.subr.mxu0 0.0
          %570 = vmatpush1.msra.mxu0 0.0
          %571 = vmatprep.subr.mxu0 0.0
          %572 = vmatpush1.msra.mxu0 0.0
          %573 = vmatprep.subr.mxu0 0.0
          %574 = vmatpush1.msra.mxu0 0.0
          %575 = vmatprep.subr.mxu0 0.0
          %576 = vmatpush1.msra.mxu0 0.0
          %577 = vmatprep.subr.mxu0 0.0
          %578 = vmatpush1.msra.mxu0 0.0
          %579 = vmatprep.subr.mxu0 0.0
          %580 = vmatpush1.msra.mxu0 0.0
          %581 = vmatprep.subr.mxu0 0.0
          %582 = vmatpush1.msra.mxu0 0.0
          %583 = vmatprep.subr.mxu0 0.0
          %584 = vmatpush1.msra.mxu0 0.0
          %585 = vmatprep.subr.mxu0 0.0
          %586 = vmatpush1.msra.mxu0 0.0
          %587 = vmatprep.subr.mxu0 0.0
          %588 = vmatpush1.msra.mxu0 0.0
          %589 = vmatprep.subr.mxu0 0.0
          %590 = vmatpush1.msra.mxu0 0.0
          %591 = vmatprep.subr.mxu0 0.0
          %592 = vmatpush1.msra.mxu0 %v559
          %593 = vmatprep.subr.mxu0 0.0
          %594 = vmatpush2.msra.mxu0 0.0
          %595 = vmatprep.subr.mxu0 0.0
          %596 = vmatpush2.msra.mxu0 0.0
          %597 = vmatprep.subr.mxu0 0.0
          %598 = vmatpush2.msra.mxu0 0.0
          %599 = vmatprep.subr.mxu0 0.0
          %600 = vmatpush2.msra.mxu0 0.0
          %601 = vmatprep.subr.mxu0 0.0
          %602 = vmatpush2.msra.mxu0 0.0
          %603 = vmatprep.subr.mxu0 0.0
          %604 = vmatpush2.msra.mxu0 0.0
          %605 = vmatprep.subr.mxu0 0.0
          %606 = vmatpush2.msra.mxu0 0.0
          %607 = vmatprep.subr.mxu0 0.0
          %608 = vmatpush2.msra.mxu0 0.0
          %609 = vmatprep.subr.mxu0 0.0
          %610 = vmatpush2.msra.mxu0 0.0
          %611 = vmatprep.subr.mxu0 0.0
          %612 = vmatpush2.msra.mxu0 0.0
          %613 = vmatprep.subr.mxu0 0.0
          %614 = vmatpush2.msra.mxu0 0.0
          %615 = vmatprep.subr.mxu0 0.0
          %616 = vmatpush2.msra.mxu0 0.0
          %617 = vmatprep.subr.mxu0 0.0
          %618 = vmatpush2.msra.mxu0 0.0
          %619 = vmatprep.subr.mxu0 0.0
          %620 = vmatpush2.msra.mxu0 0.0
          %621 = vmatprep.subr.mxu0 0.0
          %622 = vmatpush2.msra.mxu0 0.0
          %623 = vmatprep.subr.mxu0 0.0
          %624 = vmatpush2.msra.mxu0 0.0
          %625 = vmatprep.mubr.f32.mxu0 0.0
          %626 = vmatmul.mubr.f32.gmra.mxu0 %v555
          %v627 = vpop.f32.mrf.mxu0
          %v628 = vadd.f32 0.0, %v627
          %v629 = vpop.f32.mrf.mxu0
          %630 = vdwg.mxu0
          %v632 = vsel %vm553, %v450, 0
          %v635 = vsel %vm557, %v451, 0
          %637 = vmatprep.subr.mxu0 0.0
          %638 = vmatpush1.msra.mxu0 0.0
          %639 = vmatprep.subr.mxu0 0.0
          %640 = vmatpush1.msra.mxu0 0.0
          %641 = vmatprep.subr.mxu0 0.0
          %642 = vmatpush1.msra.mxu0 0.0
          %643 = vmatprep.subr.mxu0 0.0
          %644 = vmatpush1.msra.mxu0 0.0
          %645 = vmatprep.subr.mxu0 0.0
          %646 = vmatpush1.msra.mxu0 0.0
          %647 = vmatprep.subr.mxu0 0.0
          %648 = vmatpush1.msra.mxu0 0.0
          %649 = vmatprep.subr.mxu0 0.0
          %650 = vmatpush1.msra.mxu0 0.0
          %651 = vmatprep.subr.mxu0 0.0
          %652 = vmatpush1.msra.mxu0 0.0
          %653 = vmatprep.subr.mxu0 0.0
          %654 = vmatpush1.msra.mxu0 0.0
          %655 = vmatprep.subr.mxu0 0.0
          %656 = vmatpush1.msra.mxu0 0.0
          %657 = vmatprep.subr.mxu0 0.0
          %658 = vmatpush1.msra.mxu0 0.0
          %659 = vmatprep.subr.mxu0 0.0
          %660 = vmatpush1.msra.mxu0 0.0
          %661 = vmatprep.subr.mxu0 0.0
          %662 = vmatpush1.msra.mxu0 0.0
          %663 = vmatprep.subr.mxu0 0.0
          %664 = vmatpush1.msra.mxu0 0.0
          %665 = vmatprep.subr.mxu0 0.0
          %666 = vmatpush1.msra.mxu0 0.0
          %667 = vmatprep.subr.mxu0 0.0
          %668 = vmatpush1.msra.mxu0 %v635
          %669 = vmatprep.subr.mxu0 0.0
          %670 = vmatpush2.msra.mxu0 0.0
          %671 = vmatprep.subr.mxu0 0.0
          %672 = vmatpush2.msra.mxu0 0.0
          %673 = vmatprep.subr.mxu0 0.0
          %674 = vmatpush2.msra.mxu0 0.0
          %675 = vmatprep.subr.mxu0 0.0
          %676 = vmatpush2.msra.mxu0 0.0
          %677 = vmatprep.subr.mxu0 0.0
          %678 = vmatpush2.msra.mxu0 0.0
          %679 = vmatprep.subr.mxu0 0.0
          %680 = vmatpush2.msra.mxu0 0.0
          %681 = vmatprep.subr.mxu0 0.0
          %682 = vmatpush2.msra.mxu0 0.0
          %683 = vmatprep.subr.mxu0 0.0
          %684 = vmatpush2.msra.mxu0 0.0
          %685 = vmatprep.subr.mxu0 0.0
          %686 = vmatpush2.msra.mxu0 0.0
          %687 = vmatprep.subr.mxu0 0.0
          %688 = vmatpush2.msra.mxu0 0.0
          %689 = vmatprep.subr.mxu0 0.0
          %690 = vmatpush2.msra.mxu0 0.0
          %691 = vmatprep.subr.mxu0 0.0
          %692 = vmatpush2.msra.mxu0 0.0
          %693 = vmatprep.subr.mxu0 0.0
          %694 = vmatpush2.msra.mxu0 0.0
          %695 = vmatprep.subr.mxu0 0.0
          %696 = vmatpush2.msra.mxu0 0.0
          %697 = vmatprep.subr.mxu0 0.0
          %698 = vmatpush2.msra.mxu0 0.0
          %699 = vmatprep.subr.mxu0 0.0
          %700 = vmatpush2.msra.mxu0 0.0
          %701 = vmatprep.mubr.f32.mxu0 0.0
          %702 = vmatmul.mubr.f32.gmra.mxu0 %v632
          %v703 = vpop.f32.mrf.mxu0
          %v704 = vadd.f32 %v628, %v703
          %v705 = vpop.f32.mrf.mxu0
          %706 = vdwg.mxu0
          %v707 = vxor.u32 %v704, 2147483648
          %v708 = vmul.f32 %v707, 1.442695
          %v709 = vpow.pop %v708
          %v710 = vadd.f32 %v709, 1.0
          %v711 = vrcp.pop %v710
          %v712 = vmul.f32 1.0, %v711
          %vm713 = vcmask 253952
          %714 = vst.msk [vmem:[%s257] sm:$0x1] %vm713, %v712
        $region52: #{tpu_custom_call.1} parent=39 // pred_fallthru
          _
        %s715 = sand.u32 %s154, 1
        %s716 = scalar_lea.sflag [#allocation6], %s715
        %s717 = sand.u32 %s154, 1
        %s718 = scalar_lea.vmem [#allocation7], %s717
        // Predicated region
        $region53: #{tpu_custom_call.1} parent=39 // pred_check
          %p719 = pneg %p164
        $region54: #{tpu_custom_call.1} parent=39 // pred_check_branch
          %721 = sbr.rel (%p719) target = $region56
        $region55: #{tpu_custom_call.1} parent=39 // pred_region
          %s723 = ssub.s32 16, 16
          %724 = vsyncadd %s716, %s723
          %s725 = smul.addr %s26, 16
          %s726 = scalar_lea.hbm %s5, %s725
          %s728 = sshll.u32 %s718, 4
          %s729 = int_to_ptr.vmem [resolvable:$true] %s728
          %731 = dma.vmem_to_hbm [thread:$0]  %s729, 16, %s726, %s716
        $region56: #{tpu_custom_call.1} parent=39 // pred_fallthru
          _
      $region40: #{tpu_custom_call.1} parent=5 // pred_fallthru
        _
      %p732 = scmp.le.s32.totalorder 2, %s17
      // Predicated region
      $region57: #{tpu_custom_call.1} parent=5 // pred_check
        %p733 = pneg %p732
      $region58: #{tpu_custom_call.1} parent=5 // pred_check_branch
        %735 = sbr.rel (%p733) target = $region60
      $region59: #{tpu_custom_call.1} parent=5 // pred_region
        %s736 = ssub.s32 %s17, 2
        // Predicated region
        $region61: #{tpu_custom_call.1} parent=59 // pred_check
          %p737 = pneg %p170
        $region62: #{tpu_custom_call.1} parent=59 // pred_check_branch
          %739 = sbr.rel (%p737) target = $region64
        $region63: #{tpu_custom_call.1} parent=59 // pred_region
          %s740 = sand.u32 %s155, 1
          %s741 = scalar_lea.sflag [#allocation6], %s740
          %s742 = sand.u32 %s155, 1
          %s743 = scalar_lea.vmem [#allocation7], %s742
          %744 = dma.done %s741, 16
        $region64: #{tpu_custom_call.1} parent=59 // pred_fallthru
          _
      $region60: #{tpu_custom_call.1} parent=5 // pred_fallthru
        _
    $region6: #{tpu_custom_call.1} parent=1 // loop_footer
      %s21 = sadd.s32 1, %s17
    $region7: #{tpu_custom_call.1} parent=1 // loop_footer_branch
      %16 = sbr.rel target = $region3
    $region8: #{tpu_custom_call.1} parent=1 // loop_exit
      _
    %745 = vsyncpa [#allocation5], 1
    %s746 = scalar_lea.sflag [#allocation5], 1
    %747 = vsyncpa %s746, 1
    %748 = vsyncpa [#allocation6], 1
    %s749 = scalar_lea.sflag [#allocation6], 1
    %750 = vsyncpa %s749, 1

</llo_original>
